<compile_context>
chip_gen: v5e
topology: v5e:2x2
jax: 0.10.0
libtpu: 0.0.40
codegen_flags: <defaults>
</compile_context>

<pallas_src>
import jax
import jax.numpy as jnp
from jax.experimental import pallas as pl
from jax.experimental.pallas import tpu as pltpu


def _round_up(x, m):
    return ((x + m - 1) // m) * m


def _chip_budget():
    """(per-buffer block-byte cap, vmem_limit_bytes) tuned per TPU generation."""
    kind = ""
    try:
        kind = jax.devices()[0].device_kind.lower()
    except Exception:
        pass
    if "v7" in kind:
        # ~3.2 TB/s HBM: 8 MiB blocks amortize the ~0.35 us per-step overhead;
        # in+out double-buffered = 4 x 8 MiB = 32 MiB, fits the 64 MiB VMEM.
        return 8 << 20, 40 << 20
    if "v6" in kind:
        return 4 << 20, 32 << 20
    if "v5" in kind:
        return 2 << 20, 32 << 20
    return 4 << 20, 32 << 20  # unknown chip: safe middle ground


def _pick_tiles(R, L, itemsize, block_bytes):
    """Pick (tr, tl): lane-dense (128-multiple) lanes, dtype-aware row packing."""
    row_pack = {4: 8, 2: 16, 1: 32}.get(itemsize, 8)
    # Lane tile: largest 128-multiple that still leaves room for >= row_pack rows.
    max_tl = max(128, (block_bytes // (row_pack * itemsize)) // 128 * 128)
    tl = min(_round_up(L, 128), max_tl)
    if tl >= L:
        tl = L  # single block along lanes: full dim is always legal
    # Row tile: fill the remaining budget, rounded down to the packing height.
    max_tr = max(row_pack, (block_bytes // (tl * itemsize)) // row_pack * row_pack)
    tr = min(_round_up(R, row_pack), max_tr)
    if tr >= R:
        tr = R  # single block along rows: full dim is always legal
    return tr, tl


def _gate_mul_kernel(g_ref, x_ref, o_ref):
    # Steady-state body: one broadcast multiply (VPU); the kernel is DMA-bound.
    o_ref[...] = x_ref[...] * g_ref[...]


def _gate_mul_2d(x2, g2, gate_axis):
    """x2: (R, L); g2: (R, 1) if gate_axis == 0 else (1, L). Returns x2 * gate."""
    R, L = x2.shape
    itemsize = jnp.dtype(x2.dtype).itemsize
    block_bytes, vmem_limit = _chip_budget()
    tr, tl = _pick_tiles(R, L, itemsize, block_bytes)

    grid = (pl.cdiv(R, tr), pl.cdiv(L, tl))
    x_spec = pl.BlockSpec((tr, tl), lambda i, j: (i, j))
    if gate_axis == 0:
        g_spec = pl.BlockSpec((tr, 1), lambda i, j: (i, 0))
    else:
        g_spec = pl.BlockSpec((1, tl), lambda i, j: (0, j))

    return pl.pallas_call(
        _gate_mul_kernel,
        out_shape=jax.ShapeDtypeStruct((R, L), x2.dtype),
        grid=grid,
        in_specs=[g_spec, x_spec],
        out_specs=x_spec,
        compiler_params=pltpu.CompilerParams(
            dimension_semantics=("parallel", "parallel"),
            vmem_limit_bytes=vmem_limit),
    )(g2, x2)


def soft_gate_forward(x, weights, *, margin=0.0, concrete_flag=False,
                      training=True, training_flag=True, rng_key=None):
    """Pallas implementation of soft_gate.forward (forward pass only).

    weights: shape (width,) with width == C for 4-D NCHW input, or width ==
    x.shape[1] for 2-D input.  The g_w = base_width/width factor only scales the
    STE *backward* gradient in custom_STE and therefore does not appear here.
    """
    if not training_flag:
        return x
    if concrete_flag:
        margin = 0.0
    if margin > 0.5:
        raise ValueError("margin must be <= 0.5 (clip range would invert)")
    deterministic = concrete_flag or (not training)

    # clip_value(): clamp weights to [margin, 1 - margin].
    w = jnp.clip(weights.astype(jnp.float32), margin, 1.0 - margin)
    if deterministic:
        gate = w >= 0.5                                   # custom_STE, train=False
    else:
        if rng_key is None:
            raise ValueError(
                "soft_gate_forward(training=True) needs an explicit rng_key "
                "(PyTorch draws fresh randomness every forward)")
        gate = jax.random.uniform(rng_key, w.shape) < w   # prob_round_torch
    gate = gate.astype(x.dtype)
    # TODO(synk): custom_STE backward (straight-through grad with g_w scaling) is
    # not implemented here; a custom_vjp would be needed for weight gradients.

    if x.ndim == 4:
        N, C, H, W = x.shape
        hw = H * W
        if hw % 128 == 0:
            # Lane dim already 128-aligned: per-(n,c) row gate.
            x2 = x.reshape(N * C, hw)
            g2 = jnp.broadcast_to(gate[None, :], (N, C)).reshape(N * C, 1)
            out = _gate_mul_2d(x2, g2, gate_axis=0)
        else:
            # Ragged H*W (49/196/784/...): flatten C into the lane axis so the
            # output blocks stay lane-dense; gate expanded along lanes once here.
            x2 = x.reshape(N, C * hw)
            g2 = jnp.broadcast_to(gate[:, None], (C, hw)).reshape(1, C * hw)
            out = _gate_mul_2d(x2, g2, gate_axis=1)
        return out.reshape(N, C, H, W)
    elif x.ndim == 2:
        B, Wd = x.shape
        return _gate_mul_2d(x, gate.reshape(1, Wd), gate_axis=1)
    else:
        raise ValueError("soft_gate only handles 2-D or 4-D inputs")


if __name__ == "__main__":
    key = jax.random.PRNGKey(0)
    kx, kw, k2, kg, kx2 = jax.random.split(key, 5)

    N, C, H, W = 2, 4, 16, 16
    x = jax.random.normal(kx, (N, C, H, W), dtype=jnp.float32)
    # Module __init__ uses torch.ones(width); keep the (width,) shape but draw
    # deterministic values in [0, 1) so both sides of the gate are exercised.
    weights = jax.random.uniform(kw, (C,), dtype=jnp.float32)

    # --- eval / concrete path (deterministic hard threshold at 0.5) ---
    out_eval = jax.block_until_ready(soft_gate_forward(x, weights, training=False))
    gate_eval = (jnp.clip(weights, 0.0, 1.0) >= 0.5).astype(jnp.float32)
    ref_eval = x * gate_eval[None, :, None, None]
    assert out_eval.shape == x.shape and out_eval.dtype == x.dtype
    assert jnp.allclose(out_eval, ref_eval), "4-D eval path mismatch vs reference"

    # --- training path (stochastic rounding gate, same key -> exact reference) ---
    out_train = jax.block_until_ready(
        soft_gate_forward(x, weights, training=True, rng_key=kg))
    gate_train = (jax.random.uniform(kg, (C,)) <
                  jnp.clip(weights, 0.0, 1.0)).astype(jnp.float32)
    ref_train = x * gate_train[None, :, None, None]
    assert out_train.shape == x.shape
    assert jnp.allclose(out_train, ref_train), "4-D training path mismatch"

    # --- 4-D input with ragged H*W (196, not 128-aligned) -> lane-dense (N, C*H*W) path ---
    xr = jax.random.normal(kx2, (2, 4, 14, 14), dtype=jnp.float32)
    out_r = jax.block_until_ready(soft_gate_forward(xr, weights, training=False))
    assert jnp.allclose(out_r, xr * gate_eval[None, :, None, None]), \
        "4-D ragged-spatial path mismatch"

    # --- 2-D input path ---
    x2d = jax.random.normal(k2, (8, C), dtype=jnp.float32)
    out2d = jax.block_until_ready(soft_gate_forward(x2d, weights, training=False))
    assert jnp.allclose(out2d, x2d * gate_eval[None, :]), "2-D eval path mismatch"

    print("KERNEL_OK")
</pallas_src>

<mosaic_0001>
module attributes {stable_mosaic.version = 11 : i64} {
  func.func @_gate_mul_kernel(%arg0: i32, %arg1: i32, %arg2: memref<8x1xf32, #tpu.memory_space<vmem>>, %arg3: memref<8x256xf32, #tpu.memory_space<vmem>>, %arg4: memref<8x256xf32, #tpu.memory_space<vmem>>) attributes {dimension_semantics = [#tpu.dimension_semantics<parallel>, #tpu.dimension_semantics<parallel>], iteration_bounds = array<i64: 1, 1>, scalar_prefetch = 0 : i64, scratch_operands = 0 : i64, tpu.core_type = #tpu.core_type<tc>, window_params = [{transform_indices = @transform_0, window_bounds = array<i64: 8, 1>}, {transform_indices = @transform_1, window_bounds = array<i64: 8, 256>}, {transform_indices = @transform_2, window_bounds = array<i64: 8, 256>}]} {
    %c0 = arith.constant 0 : index
    %c0_0 = arith.constant 0 : index
    %0 = vector.load %arg3[%c0, %c0_0] : memref<8x256xf32, #tpu.memory_space<vmem>>, vector<8x256xf32>
    %c0_1 = arith.constant 0 : index
    %c0_2 = arith.constant 0 : index
    %1 = vector.load %arg2[%c0_1, %c0_2] : memref<8x1xf32, #tpu.memory_space<vmem>>, vector<8x1xf32>
    %2 = vector.broadcast %1 : vector<8x1xf32> to vector<8x256xf32>
    %3 = arith.mulf %0, %2 : vector<8x256xf32>
    %c0_3 = arith.constant 0 : index
    %c0_4 = arith.constant 0 : index
    %4 = vector.load %arg4[%c0_3, %c0_4] : memref<8x256xf32, #tpu.memory_space<vmem>>, vector<8x256xf32>
    tpu.vector_store %arg4[%c0_3, %c0_4], %3 {strides = array<i32>} : memref<8x256xf32, #tpu.memory_space<vmem>>, vector<8x256xf32>,
    return
  }
  func.func @transform_0(%arg0: i32, %arg1: i32) -> (i32, i32) {
    %c0_i32 = arith.constant 0 : i32
    %c0_i32_0 = arith.constant 0 : i32
    return %arg0, %c0_i32 : i32, i32
  }
  func.func @transform_1(%arg0: i32, %arg1: i32) -> (i32, i32) {
    %c0_i32 = arith.constant 0 : i32
    return %arg0, %arg1 : i32, i32
  }
  func.func @transform_2(%arg0: i32, %arg1: i32) -> (i32, i32) {
    %c0_i32 = arith.constant 0 : i32
    return %arg0, %arg1 : i32, i32
  }
}

</mosaic_0001>

<llo_original>
// kernel: tpu_custom_call.1
$region0: #{tpu_custom_call.1}
  #allocation0 [shape = 'u32[]', space=smem, size = 0x4, offset = 0x4, fixed_abs, tag = 'smem constant byte address 0x4 - core index']
  #allocation1 [shape = 'u32[72,128]{1,0:T(1,128)}', space=vmem, size = 0x9000, scoped, tag = 'internal scratch']
  %s0 = inlined_call_operand.vmem [shape: f32[8,1], index: 0, kind: input, shape index: {}]
  %s1 = inlined_call_operand.hbm [shape: f32[8,256], index: 1, kind: input, shape index: {}]
  %s2 = inlined_call_operand.hbm [shape: f32[8,256], index: 2, kind: output, shape index: {}]
  %s3 = sld [smem:[#allocation0]]
  $region22: #{tpu_custom_call.1} parent=0
    _
  %s5 = ssub.s32 1, %s3
  %s6 = scalar_select 0, %s5, %s3
  $region1: #{tpu_custom_call.1} parent=0
    #allocation2 [shape = 'u8[8192]{0}', space=vmem, size = 0x2000, scoped, tag = 'input window, operand 1, single buffered']
    #allocation3 [shape = 's32[1]{0}', space=sflag, size = 0x4, scoped, tag = 'scoped memory for tpu_custom_call.1']
    #allocation4 [shape = 's32[1]{0}', space=sflag, size = 0x4, scoped, tag = 'scoped memory for tpu_custom_call.1']
    #allocation5 [shape = 'u8[8192]{0}', space=vmem, size = 0x2000, scoped, tag = 'output window, operand 0, single buffered']
    %7 = vsyncpa [#allocation3], 0
    %8 = vsyncpa [#allocation4], 0
    // Predicated region
    $region2: #{tpu_custom_call.1} parent=1 // pred_check
      _
    $region3: #{tpu_custom_call.1} parent=1 // pred_check_branch
      %10 = sbr.rel (0) target = $region5
    $region4: #{tpu_custom_call.1} parent=1 // pred_region
      _
    $region5: #{tpu_custom_call.1} parent=1 // pred_fallthru
      _
    // Predicated region
    $region6: #{tpu_custom_call.1} parent=1 // pred_check
      _
    $region7: #{tpu_custom_call.1} parent=1 // pred_check_branch
      %12 = sbr.rel (0) target = $region9
    $region8: #{tpu_custom_call.1} parent=1 // pred_region
      %14 = vsyncadd [#allocation3], 0
      %s16 = sshll.u32 %s1, 4
      %s17 = int_to_ptr.hbm [resolvable:$true] %s16
      %s18 = sshll.u32 [#allocation2], 4
      %s19 = int_to_ptr.vmem [resolvable:$true] %s18
      %21 = dma.hbm_to_vmem [thread:$0]  %s17, 256, %s19, [#allocation3]
    $region9: #{tpu_custom_call.1} parent=1 // pred_fallthru
      _
    // Predicated region
    $region10: #{tpu_custom_call.1} parent=1 // pred_check
      _
    $region11: #{tpu_custom_call.1} parent=1 // pred_check_branch
      %23 = sbr.rel (0) target = $region13
    $region12: #{tpu_custom_call.1} parent=1 // pred_region
      %25 = dma.done [#allocation3], 256
    $region13: #{tpu_custom_call.1} parent=1 // pred_fallthru
      _
    %v26 = vld [vmem:[#allocation2] sm:$0xff]
    %v27 = vld [vmem:[#allocation2 + $0x8] sm:$0xff]
    %v28 = vld [vmem:[%s0] sm:$0xff]
    %30 = vset.pattern.permute.xlu0 0
    %31 = vperm.xlu0 %30, %v28
    %v32 = vpop.permute.xlu0 %31
    %v34 = vmul.f32 %v26, %v32
    %v35 = vmul.f32 %v27, %v32
    %36 = vst [vmem:[#allocation5] sm:$0xff] %v34
    %37 = vst [vmem:[#allocation5 + $0x8] sm:$0xff] %v35
    // Predicated region
    $region14: #{tpu_custom_call.1} parent=1 // pred_check
      _
    $region15: #{tpu_custom_call.1} parent=1 // pred_check_branch
      %39 = sbr.rel (0) target = $region17
    $region16: #{tpu_custom_call.1} parent=1 // pred_region
      %41 = vsyncadd [#allocation4], 0
      %s43 = sshll.u32 [#allocation5], 4
      %s44 = int_to_ptr.vmem [resolvable:$true] %s43
      %s45 = sshll.u32 %s2, 4
      %s46 = int_to_ptr.hbm [resolvable:$true] %s45
      %48 = dma.vmem_to_hbm [thread:$0]  %s44, 256, %s46, [#allocation4]
    $region17: #{tpu_custom_call.1} parent=1 // pred_fallthru
      _
    // Predicated region
    $region18: #{tpu_custom_call.1} parent=1 // pred_check
      _
    $region19: #{tpu_custom_call.1} parent=1 // pred_check_branch
      %50 = sbr.rel (0) target = $region21
    $region20: #{tpu_custom_call.1} parent=1 // pred_region
      %52 = dma.done [#allocation4], 256
    $region21: #{tpu_custom_call.1} parent=1 // pred_fallthru
      _
    %53 = vsyncpa [#allocation3], 1
    %54 = vsyncpa [#allocation4], 1

</llo_original>
